<compile_context>
chip_gen: v7x
topology: tpu7x:2x2x1
jax: 0.10.0
libtpu: 0.0.40
codegen_flags: <defaults>
</compile_context>

<pallas_src>
import jax
import jax.numpy as jnp
from jax.experimental import pallas as pl
from jax.experimental.pallas import tpu as pltpu


def _make_kernel(L, N, bb):
    """Kernel body for latent size L, flat spatial size N = S*S, batch block bb."""

    def kernel(x_ref, coords_ref, o_ref):
        # x_ref:      (bb, L)     — batch block of latents (blocked in_spec, no dynamic slice)
        # coords_ref: (2, N)      — precomputed coordinate channels, resident across steps
        # o_ref:      (bb, L+2, N) — lane-dense output block
        xb = x_ref[...].astype(o_ref.dtype)                                  # (bb, L): cast BEFORE broadcast
        o_ref[:, :L, :] = jnp.broadcast_to(xb[:, :, None], (bb, L, N))       # latent channels
        o_ref[:, L:, :] = jnp.broadcast_to(coords_ref[...][None], (bb, 2, N))  # xx / yy channels

    return kernel


def spatial_broadcast(x, width, height):
    """Pallas equivalent of SpatialBroadcast.forward(x, width, height)."""
    assert width == height, "PyTorch module's torch.cat requires width == height"
    B, L = x.shape
    S = int(width)
    N = S * S
    C = L + 2
    out_dtype = x.dtype
    itemsize = jnp.dtype(out_dtype).itemsize

    # ---- batch-block selection --------------------------------------------------------------
    TARGET_BLOCK_BYTES = 4 * 1024 * 1024   # 2x double-buffered fits v5e's 16 MiB scoped default
    MIN_GRID_STEPS = 4                     # aim for >=2 steps per TensorCore on v7x
    per_item_bytes = C * N * itemsize
    bb_bytes = max(1, TARGET_BLOCK_BYTES // per_item_bytes)
    bb_steps = pl.cdiv(B, MIN_GRID_STEPS)
    bb = min(bb_bytes, bb_steps)
    bb = max(8, (bb // 8) * 8)             # 8-aligned sublanes; blocked (bb, L) in_spec needs bb % 8 == 0

    # Pad B up to a multiple of bb (wrapper-side); never let the grid collapse to a single step.
    B_pad = ((B + bb - 1) // bb) * bb
    if B_pad // bb < 2:
        B_pad = 2 * bb
    grid = (B_pad // bb,)

    x_in = x if B_pad == B else jnp.pad(x, ((0, B_pad - B), (0, 0)))

    # ---- coordinate channels hoisted out of the kernel (computed once, DMA'd once) -----------
    lin = jnp.linspace(-1.0, 1.0, S, dtype=out_dtype)
    yy, xx = jnp.meshgrid(lin, lin, indexing="ij")       # yy[i,j]=lin[i], xx[i,j]=lin[j]
    coords = jnp.stack((xx, yy), axis=0).reshape(2, N)   # channel L = xx, channel L+1 = yy

    kernel = _make_kernel(L, N, bb)
    out_flat = pl.pallas_call(
        kernel,
        out_shape=jax.ShapeDtypeStruct((B_pad, C, N), out_dtype),
        grid=grid,
        in_specs=[
            pl.BlockSpec((bb, L), lambda i: (i, 0)),     # blocked latents; L equals full dim
            pl.BlockSpec((2, N), lambda i: (0, 0)),      # resident coordinate channels
        ],
        # Lane-dense output block: last dim N (= 256 for S=16, a multiple of 128) -> unmasked
        # full-width vector stores; pipelined (double-buffered) over the batch grid.
        out_specs=pl.BlockSpec((bb, C, N), lambda i: (i, 0, 0)),
        compiler_params=pltpu.CompilerParams(
            dimension_semantics=("parallel",),           # split batch steps across TCs on v7x
        ),
        cost_estimate=pl.CostEstimate(
            flops=0,
            transcendentals=0,
            bytes_accessed=B_pad * C * N * itemsize + B_pad * L * itemsize + 2 * N * itemsize,
        ),
    )(x_in, coords)

    # Drop padded batch rows; free contiguous split of the flat spatial axis back to (S, S).
    return out_flat[:B].reshape(B, C, S, S)


def _reference(x, width, height):
    """Pure-JAX reference mirroring the PyTorch code path."""
    B, L = x.shape
    feat = jnp.broadcast_to(x[:, :, None, None], (B, L, width, height))
    xx_lin = jnp.linspace(-1.0, 1.0, width, dtype=x.dtype)
    yy_lin = jnp.linspace(-1.0, 1.0, height, dtype=x.dtype)
    yy, xx = jnp.meshgrid(yy_lin, xx_lin, indexing="ij")  # each (H, W)
    coords = jnp.stack((xx, yy), axis=0)                   # (2, H, W)
    coords = jnp.broadcast_to(coords[None], (B, 2, height, width))
    return jnp.concatenate((feat, coords), axis=1)


if __name__ == "__main__":
    key = jax.random.PRNGKey(0)
    B, L, S = 2, 4, 16
    x = jax.random.normal(key, (B, L), dtype=jnp.float32)

    out = spatial_broadcast(x, S, S)
    out = jax.block_until_ready(out)

    ref = _reference(x, S, S)
    assert out.shape == (B, L + 2, S, S), out.shape
    assert jnp.allclose(out, ref, atol=1e-6), "mismatch vs reference"

    print("KERNEL_OK")
</pallas_src>

<mosaic_0001>
module attributes {stable_mosaic.version = 11 : i64} {
  func.func @kernel(%arg0: i32, %arg1: memref<8x4xf32, #tpu.memory_space<vmem>>, %arg2: memref<2x256xf32, #tpu.memory_space<vmem>>, %arg3: memref<8x6x256xf32, #tpu.memory_space<vmem>>) attributes {dimension_semantics = [#tpu.dimension_semantics<parallel>], iteration_bounds = array<i64: 2>, scalar_prefetch = 0 : i64, scratch_operands = 0 : i64, tpu.core_type = #tpu.core_type<tc>, window_params = [{transform_indices = @transform_0, window_bounds = array<i64: 8, 4>}, {pipeline_mode = #tpu.pipeline_mode<synchronous>, transform_indices = @transform_1, window_bounds = array<i64: 2, 256>}, {transform_indices = @transform_2, window_bounds = array<i64: 8, 6, 256>}]} {
    %c0 = arith.constant 0 : index
    %c0_0 = arith.constant 0 : index
    %0 = vector.load %arg1[%c0, %c0_0] : memref<8x4xf32, #tpu.memory_space<vmem>>, vector<8x4xf32>
    %1 = vector.shape_cast %0 : vector<8x4xf32> to vector<8x4x1xf32>
    %2 = vector.shape_cast %1 : vector<8x4x1xf32> to vector<8x4x1xf32>
    %3 = vector.broadcast %2 : vector<8x4x1xf32> to vector<8x4x256xf32>
    %c0_1 = arith.constant 0 : index
    %c0_2 = arith.constant 0 : index
    %c0_3 = arith.constant 0 : index
    %4 = vector.load %arg3[%c0_1, %c0_2, %c0_3] : memref<8x6x256xf32, #tpu.memory_space<vmem>>, vector<8x4x256xf32>
    tpu.vector_store %arg3[%c0_1, %c0_2, %c0_3], %3 {strides = array<i32>} : memref<8x6x256xf32, #tpu.memory_space<vmem>>, vector<8x4x256xf32>,
    %c0_4 = arith.constant 0 : index
    %c0_5 = arith.constant 0 : index
    %5 = vector.load %arg2[%c0_4, %c0_5] : memref<2x256xf32, #tpu.memory_space<vmem>>, vector<2x256xf32>
    %6 = vector.shape_cast %5 : vector<2x256xf32> to vector<1x2x256xf32>
    %7 = vector.shape_cast %6 : vector<1x2x256xf32> to vector<1x2x256xf32>
    %8 = vector.broadcast %7 : vector<1x2x256xf32> to vector<8x2x256xf32>
    %c0_6 = arith.constant 0 : index
    %c4 = arith.constant 4 : index
    %c0_7 = arith.constant 0 : index
    %9 = vector.load %arg3[%c0_6, %c4, %c0_7] : memref<8x6x256xf32, #tpu.memory_space<vmem>>, vector<8x2x256xf32>
    tpu.vector_store %arg3[%c0_6, %c4, %c0_7], %8 {strides = array<i32>} : memref<8x6x256xf32, #tpu.memory_space<vmem>>, vector<8x2x256xf32>,
    return
  }
  func.func @transform_0(%arg0: i32) -> (i32, i32) {
    %c0_i32 = arith.constant 0 : i32
    %c0_i32_0 = arith.constant 0 : i32
    return %arg0, %c0_i32 : i32, i32
  }
  func.func @transform_1(%arg0: i32) -> (i32, i32) {
    %c0_i32 = arith.constant 0 : i32
    %c0_i32_0 = arith.constant 0 : i32
    %c0_i32_1 = arith.constant 0 : i32
    return %c0_i32, %c0_i32_0 : i32, i32
  }
  func.func @transform_2(%arg0: i32) -> (i32, i32, i32) {
    %c0_i32 = arith.constant 0 : i32
    %c0_i32_0 = arith.constant 0 : i32
    %c0_i32_1 = arith.constant 0 : i32
    return %arg0, %c0_i32, %c0_i32_0 : i32, i32, i32
  }
}

</mosaic_0001>

<llo_original>
// kernel: tpu_custom_call.1
$region0: #{tpu_custom_call.1}
  #allocation0 [shape = 'u32[]', space=smem, size = 0x4, offset = 0x4, fixed_abs, tag = 'smem constant byte address 0x4 - core index']
  #allocation1 [shape = 'u32[144,128]{1,0:T(1,128)}', space=vmem, size = 0x12000, scoped, tag = 'internal scratch']
  %s0 = inlined_call_operand.vmem [shape: f32[16,4], index: 0, kind: input, shape index: {}]
  %s1 = inlined_call_operand.vmem [shape: f32[2,256], index: 1, kind: input, shape index: {}]
  %s2 = inlined_call_operand.vmem [shape: f32[16,6,256], index: 2, kind: output, shape index: {}]
  %s3 = sld [smem:[#allocation0]]
  $region41: #{tpu_custom_call.1} parent=0
    _
  %s5 = ssub.s32 1, %s3
  %s6 = scalar_select 0, %s5, %s3
  loop: start=0, step=1, limit=4
  $region2: #{tpu_custom_call.1} parent=0 // loop_pre_header
    _
  $region3: #{tpu_custom_call.1} parent=0 // loop_header
    %s8 = sphi 0, %s12
    %p9 = scmp.ge.s32.totalorder %s8, 4
    %s18 = sphi 0, %s20
    %s21 = sphi 0, %s18
    %s22 = sphi 0, %s21
    %s38 = sphi 0, %s22
    %s42 = sphi 0, %s42
    %s44 = sphi 0, %s42
    %s45 = sphi 0, %s44
    %s59 = sphi 0, %s45
    %s65 = sphi 0, %s67
    %s68 = sphi 0, %s65
    %s69 = sphi 0, %s68
    %s85 = sphi 0, %s69
  $region4: #{tpu_custom_call.1} parent=0 // loop_header_branch
    %11 = sbr.rel (%p9) target = $region8
  $region5: #{tpu_custom_call.1} parent=0 // loop_body
    %s13 = ssub.s32 %s8, 1
    %s14 = ssub.s32 %s8, 2
    %s15 = sadd.s32 %s8, 1
    %s16 = ssub.s32 %s8, %s15
    %p17 = scmp.eq.s32.totalorder %s16, 0
    %s19 = sadd.s32 %s18, 1
    %s20 = scalar_select %p17, %s18, %s19
    %p23 = pneg %p17
    %p24 = scmp.eq.s32.totalorder %s8, 1
    %p25 = por %p23, %p24
    %p26 = scmp.ne.s32.totalorder %s18, %s21
    %p27 = scmp.eq.s32.totalorder %s8, 0
    %p28 = por %p26, %p27
    %p29 = scmp.ne.s32.totalorder %s18, %s21
    %p30 = scmp.eq.s32.totalorder %s13, 1
    %p31 = por %p29, %p30
    %p32 = scmp.ne.s32.totalorder %s21, %s22
    %p33 = scmp.eq.s32.totalorder %s13, 0
    %p34 = por %p32, %p33
    %p35 = scmp.ne.s32.totalorder %s21, %s22
    %p36 = scmp.eq.s32.totalorder %s14, 1
    %p37 = por %p35, %p36
    %p39 = scmp.ne.s32.totalorder %s22, %s38
    %p40 = scmp.eq.s32.totalorder %s14, 0
    %p41 = por %p39, %p40
    %s43 = sadd.s32 %s42, 1
    %p46 = scmp.eq.s32.totalorder %s8, 1
    %p47 = scmp.ne.s32.totalorder %s42, %s44
    %p48 = scmp.eq.s32.totalorder %s8, 0
    %p49 = por %p47, %p48
    %p50 = scmp.ne.s32.totalorder %s42, %s44
    %p51 = scmp.eq.s32.totalorder %s13, 1
    %p52 = por %p50, %p51
    %p53 = scmp.ne.s32.totalorder %s44, %s45
    %p54 = scmp.eq.s32.totalorder %s13, 0
    %p55 = por %p53, %p54
    %p56 = scmp.ne.s32.totalorder %s44, %s45
    %p57 = scmp.eq.s32.totalorder %s14, 1
    %p58 = por %p56, %p57
    %p60 = scmp.ne.s32.totalorder %s45, %s59
    %p61 = scmp.eq.s32.totalorder %s14, 0
    %p62 = por %p60, %p61
    %s63 = ssub.s32 %s8, %s15
    %p64 = scmp.eq.s32.totalorder %s63, 0
    %s66 = sadd.s32 %s65, 1
    %s67 = scalar_select %p64, %s65, %s66
    %p70 = pneg %p64
    %p71 = scmp.eq.s32.totalorder %s8, 1
    %p72 = por %p70, %p71
    %p73 = scmp.ne.s32.totalorder %s65, %s68
    %p74 = scmp.eq.s32.totalorder %s8, 0
    %p75 = por %p73, %p74
    %p76 = scmp.ne.s32.totalorder %s65, %s68
    %p77 = scmp.eq.s32.totalorder %s13, 1
    %p78 = por %p76, %p77
    %p79 = scmp.ne.s32.totalorder %s68, %s69
    %p80 = scmp.eq.s32.totalorder %s13, 0
    %p81 = por %p79, %p80
    %p82 = scmp.ne.s32.totalorder %s68, %s69
    %p83 = scmp.eq.s32.totalorder %s14, 1
    %p84 = por %p82, %p83
    %p86 = scmp.ne.s32.totalorder %s69, %s85
    %p87 = scmp.eq.s32.totalorder %s14, 0
    %p88 = por %p86, %p87
    %p89 = scmp.le.s32.totalorder 1, %s8
    %p90 = scmp.lt.s32.totalorder %s8, 3
    %p91 = pnand %p89, %p90
    %p92 = pneg %p91
    // Predicated region
    $region9: #{tpu_custom_call.1} parent=5 // pred_check
      _
    $region10: #{tpu_custom_call.1} parent=5 // pred_check_branch
      %94 = sbr.rel (%p91) target = $region12
    $region11: #{tpu_custom_call.1} parent=5 // pred_region
      %s95 = ssub.s32 %s8, 1
      // Predicated region
      $region13: #{tpu_custom_call.1} parent=11 // pred_check
        %p96 = pneg %p55
      $region14: #{tpu_custom_call.1} parent=11 // pred_check_branch
        %98 = sbr.rel (%p96) target = $region16
      $region15: #{tpu_custom_call.1} parent=11 // pred_region
        _
      $region16: #{tpu_custom_call.1} parent=11 // pred_fallthru
        _
    $region12: #{tpu_custom_call.1} parent=5 // pred_fallthru
      _
    %p99 = scmp.lt.s32.totalorder %s8, 2
    // Predicated region
    $region17: #{tpu_custom_call.1} parent=5 // pred_check
      %p100 = pneg %p99
    $region18: #{tpu_custom_call.1} parent=5 // pred_check_branch
      %102 = sbr.rel (%p100) target = $region20
    $region19: #{tpu_custom_call.1} parent=5 // pred_region
      // Predicated region
      $region21: #{tpu_custom_call.1} parent=19 // pred_check
        %p103 = pneg %p28
      $region22: #{tpu_custom_call.1} parent=19 // pred_check_branch
        %105 = sbr.rel (%p103) target = $region24
      $region23: #{tpu_custom_call.1} parent=19 // pred_region
        %p106 = scmp.lt.s32.totalorder %s8, 1
        %s107 = scalar_select %p106, %s8, 1
        %s108 = smul.addr %s107, 8
        %s109 = scalar_lea.vmem %s0, %s108
      $region24: #{tpu_custom_call.1} parent=19 // pred_fallthru
        _
    $region20: #{tpu_custom_call.1} parent=5 // pred_fallthru
      _
    %p110 = scmp.le.s32.totalorder 1, %s8
    %p111 = scmp.lt.s32.totalorder %s8, 3
    %p112 = pnand %p110, %p111
    %p113 = pneg %p112
    // Predicated region
    $region25: #{tpu_custom_call.1} parent=5 // pred_check
      _
    $region26: #{tpu_custom_call.1} parent=5 // pred_check_branch
      %115 = sbr.rel (%p112) target = $region28
    $region27: #{tpu_custom_call.1} parent=5 // pred_region
      %s116 = ssub.s32 %s8, 1
      %p117 = scmp.lt.s32.totalorder %s13, 1
      %s118 = scalar_select %p117, %s13, 1
      %s119 = smul.addr %s118, 8
      %s120 = scalar_lea.vmem %s0, %s119
      %p121 = pneg %p34
      %p122 = pneg %p31
      %p123 = pneg %p55
      %p124 = pneg %p52
      %p125 = pneg %p81
      %p126 = pneg %p78
      %s127 = smul.u32 8, %s13
      %p128 = scmp.lt.s32.totalorder %s127, 15
      %s129 = scalar_select %p128, %s127, 15
      %s130 = smul.addr %s129, 2
      %s131 = smul.addr %s130, 8
      %s132 = scalar_lea.vmem %s2, %s131
      %p133 = scmp.lt.s32.totalorder %s13, 1
      %s134 = scalar_select %p133, %s13, 1
      %s135 = smul.addr %s134, 8
      %s136 = scalar_lea.vmem %s0, %s135
      %s137 = smul.u32 8, %s13
      %p138 = scmp.lt.s32.totalorder %s137, 15
      %s139 = scalar_select %p138, %s137, 15
      %s140 = smul.addr %s139, 2
      %s141 = smul.addr %s140, 8
      %s142 = scalar_lea.vmem %s2, %s141
      %s143 = smul.u32 8, %s13
      %v144 = vld [vmem:[%s136] sm:$0xff]
      %v145 = vlaneseq
      %v146 = vshrl.u32 %v145, 7
      %v147 = vsub.s32 0, %v146
      %v148 = vrot.slane %v144, %v147
      %150 = vbcast.lane.b32.xlu0 %v148, 256
      %v151 = vpop.permute.xlu0 %150
      %v152 = vlaneseq
      %v153 = vshrl.u32 %v152, 7
      %v154 = vsub.s32 1, %v153
      %v155 = vrot.slane %v144, %v154
      %157 = vbcast.lane.b32.xlu0 %v155, 256
      %v158 = vpop.permute.xlu0 %157
      %v159 = vlaneseq
      %v160 = vshrl.u32 %v159, 7
      %v161 = vsub.s32 2, %v160
      %v162 = vrot.slane %v144, %v161
      %164 = vbcast.lane.b32.xlu0 %v162, 256
      %v165 = vpop.permute.xlu0 %164
      %v166 = vlaneseq
      %v167 = vshrl.u32 %v166, 7
      %v168 = vsub.s32 3, %v167
      %v169 = vrot.slane %v144, %v168
      %171 = vbcast.lane.b32.xlu0 %v169, 256
      %v172 = vpop.permute.xlu0 %171
      %v173 = vlaneseq
      %v174 = vshrl.u32 %v173, 7
      %v175 = vsub.s32 4, %v174
      %v176 = vrot.slane %v144, %v175
      %178 = vbcast.lane.b32.xlu0 %v176, 256
      %v179 = vpop.permute.xlu0 %178
      %v180 = vlaneseq
      %v181 = vshrl.u32 %v180, 7
      %v182 = vsub.s32 5, %v181
      %v183 = vrot.slane %v144, %v182
      %185 = vbcast.lane.b32.xlu0 %v183, 256
      %v186 = vpop.permute.xlu0 %185
      %v187 = vlaneseq
      %v188 = vshrl.u32 %v187, 7
      %v189 = vsub.s32 6, %v188
      %v190 = vrot.slane %v144, %v189
      %192 = vbcast.lane.b32.xlu0 %v190, 256
      %v193 = vpop.permute.xlu0 %192
      %v194 = vlaneseq
      %v195 = vshrl.u32 %v194, 7
      %v196 = vsub.s32 7, %v195
      %v197 = vrot.slane %v144, %v196
      %199 = vbcast.lane.b32.xlu0 %v197, 256
      %v200 = vpop.permute.xlu0 %199
      %201 = vst [vmem:[%s142] sm:$0xf] %v151
      %202 = vst [vmem:[%s142 + $0x8] sm:$0xf] %v151
      %203 = vst [vmem:[%s142 + $0x10] sm:$0xf] %v158
      %204 = vst [vmem:[%s142 + $0x18] sm:$0xf] %v158
      %205 = vst [vmem:[%s142 + $0x20] sm:$0xf] %v165
      %206 = vst [vmem:[%s142 + $0x28] sm:$0xf] %v165
      %207 = vst [vmem:[%s142 + $0x30] sm:$0xf] %v172
      %208 = vst [vmem:[%s142 + $0x38] sm:$0xf] %v172
      %209 = vst [vmem:[%s142 + $0x40] sm:$0xf] %v179
      %210 = vst [vmem:[%s142 + $0x48] sm:$0xf] %v179
      %211 = vst [vmem:[%s142 + $0x50] sm:$0xf] %v186
      %212 = vst [vmem:[%s142 + $0x58] sm:$0xf] %v186
      %213 = vst [vmem:[%s142 + $0x60] sm:$0xf] %v193
      %214 = vst [vmem:[%s142 + $0x68] sm:$0xf] %v193
      %215 = vst [vmem:[%s142 + $0x70] sm:$0xf] %v200
      %216 = vst [vmem:[%s142 + $0x78] sm:$0xf] %v200
      %v217 = vld [vmem:[%s1] sm:$0xf]
      %v220 = vunpack.c.l.s4 1983009808
      %v221 = vunpack.c.0.s8 %v220
      %v222 = vlaneseq
      %v223 = vshrl.u32 %v222, 7
      %v224 = vsub.s32 %v221, %v223
      %v225 = vrot.slane %v217, %v224
      %v226 = vcombine.low %v225, %v225
      %229 = vst [vmem:[%s142] sm:$0x30] %v226
      %230 = vst [vmem:[%s142 + $0x8] sm:$0x30] %v225
      %231 = vst [vmem:[%s142 + $0x10] sm:$0x30] %v226
      %232 = vst [vmem:[%s142 + $0x18] sm:$0x30] %v225
      %233 = vst [vmem:[%s142 + $0x20] sm:$0x30] %v226
      %234 = vst [vmem:[%s142 + $0x28] sm:$0x30] %v225
      %235 = vst [vmem:[%s142 + $0x30] sm:$0x30] %v226
      %236 = vst [vmem:[%s142 + $0x38] sm:$0x30] %v225
      %237 = vst [vmem:[%s142 + $0x40] sm:$0x30] %v226
      %238 = vst [vmem:[%s142 + $0x48] sm:$0x30] %v225
      %239 = vst [vmem:[%s142 + $0x50] sm:$0x30] %v226
      %240 = vst [vmem:[%s142 + $0x58] sm:$0x30] %v225
      %241 = vst [vmem:[%s142 + $0x60] sm:$0x30] %v226
      %242 = vst [vmem:[%s142 + $0x68] sm:$0x30] %v225
      %243 = vst [vmem:[%s142 + $0x70] sm:$0x30] %v226
      %244 = vst [vmem:[%s142 + $0x78] sm:$0x30] %v225
      %s245 = smul.u32 8, %s13
      %p246 = scmp.lt.s32.totalorder %s245, 15
      %s247 = scalar_select %p246, %s245, 15
      %s248 = smul.addr %s247, 2
      %s249 = smul.addr %s248, 8
      %s250 = scalar_lea.vmem %s2, %s249
      // Predicated region
      $region29: #{tpu_custom_call.1} parent=27 // pred_check
        %p251 = pneg %p78
      $region30: #{tpu_custom_call.1} parent=27 // pred_check_branch
        %253 = sbr.rel (%p251) target = $region32
      $region31: #{tpu_custom_call.1} parent=27 // pred_region
        %s254 = smul.u32 8, %s13
      $region32: #{tpu_custom_call.1} parent=27 // pred_fallthru
        _
    $region28: #{tpu_custom_call.1} parent=5 // pred_fallthru
      _
    %p255 = scmp.le.s32.totalorder 2, %s8
    // Predicated region
    $region33: #{tpu_custom_call.1} parent=5 // pred_check
      %p256 = pneg %p255
    $region34: #{tpu_custom_call.1} parent=5 // pred_check_branch
      %258 = sbr.rel (%p256) target = $region36
    $region35: #{tpu_custom_call.1} parent=5 // pred_region
      %s259 = ssub.s32 %s8, 2
      // Predicated region
      $region37: #{tpu_custom_call.1} parent=35 // pred_check
        %p260 = pneg %p84
      $region38: #{tpu_custom_call.1} parent=35 // pred_check_branch
        %262 = sbr.rel (%p260) target = $region40
      $region39: #{tpu_custom_call.1} parent=35 // pred_region
        %s263 = smul.u32 8, %s14
        %p264 = scmp.lt.s32.totalorder %s263, 15
        %s265 = scalar_select %p264, %s263, 15
        %s266 = smul.addr %s265, 2
        %s267 = smul.addr %s266, 8
        %s268 = scalar_lea.vmem %s2, %s267
      $region40: #{tpu_custom_call.1} parent=35 // pred_fallthru
        _
    $region36: #{tpu_custom_call.1} parent=5 // pred_fallthru
      _
  $region6: #{tpu_custom_call.1} parent=0 // loop_footer
    %s12 = sadd.s32 1, %s8
  $region7: #{tpu_custom_call.1} parent=0 // loop_footer_branch
    %7 = sbr.rel target = $region3
  $region8: #{tpu_custom_call.1} parent=0 // loop_exit
    _

</llo_original>
